<compile_context>
chip_gen: v5e
topology: v5e:2x2
jax: 0.10.0
libtpu: 0.0.40
codegen_flags: <defaults>
</compile_context>

<pallas_src>
import functools

import jax
import jax.numpy as jnp
from jax.experimental import pallas as pl
from jax.experimental.pallas import tpu as pltpu

KSIZES = (5, 9, 13)   # realized as a cascade of k=5 pools: 5, 5∘5=9, 5∘5∘5=13
_P = 2                # (5 - 1) // 2 : halo of each cascade stage


def _neg_limit(dtype):
    if jnp.issubdtype(dtype, jnp.floating):
        return jnp.array(-jnp.inf, dtype=dtype)
    return jnp.array(jnp.iinfo(dtype).min, dtype=dtype)


def _spp_kernel(x_ref, o_ref, pad_ref, *, H, W, TC, OFF):
    """x_ref: (TC, H*W); o_ref: (4, TC, H*W); pad_ref: (TC, 2*OFF + H*W)."""
    L = H * W
    dtype = x_ref.dtype
    neg = _neg_limit(dtype)

    # -inf halos around the interior [OFF, OFF + L). Filled once per grid step
    # (scratch ownership differs per megacore), they stay -inf across all
    # three cascaded pools because only the interior is ever overwritten.
    # Both fills start at 128-aligned offsets (OFF is a multiple of 128).
    pad_ref[:, :OFF] = jnp.full((TC, OFF), neg, dtype)
    pad_ref[:, OFF + L:2 * OFF + L] = jnp.full((TC, OFF), neg, dtype)

    # Column-validity masks for horizontal shifts on the flattened W axis
    # (hoisted: computed once, reused by all three cascaded pools).
    w_idx = jax.lax.broadcasted_iota(jnp.int32, (TC, L), dimension=1) % W
    right_ok = [w_idx < (W - d) for d in range(1, _P + 1)]    # reading f + d
    left_ok = [w_idx >= d for d in range(1, _P + 1)]          # reading f - d

    x = x_ref[...]
    o_ref[0] = x                       # identity branch of the channel concat

    cur = x
    for slot in (1, 2, 3):             # p5, p9 = pool5(p5), p13 = pool5(p9)
        # --- horizontal pass: offsets ±1, ±2 along the flattened W axis ---
        pad_ref[:, OFF:OFF + L] = cur
        acc = cur
        for d in range(1, _P + 1):
            sh_r = pad_ref[:, OFF + d:OFF + d + L]
            sh_l = pad_ref[:, OFF - d:OFF - d + L]
            acc = jnp.maximum(acc, jnp.where(right_ok[d - 1], sh_r, neg))
            acc = jnp.maximum(acc, jnp.where(left_ok[d - 1], sh_l, neg))
        # --- vertical pass: offsets ±W, ±2W; -inf halo handles the edges ---
        pad_ref[:, OFF:OFF + L] = acc
        out = acc
        for d in range(1, _P + 1):
            out = jnp.maximum(out, pad_ref[:, OFF + d * W:OFF + d * W + L])
            out = jnp.maximum(out, pad_ref[:, OFF - d * W:OFF - d * W + L])
        o_ref[slot] = out
        cur = out


def _pick_channel_block(C, max_tc=64):
    """Largest channel block <= max_tc dividing C (prefers multiples of 8)."""
    if C <= max_tc:
        return C
    divs = [d for d in range(1, max_tc + 1) if C % d == 0]
    aligned = [d for d in divs if d % 8 == 0]
    return max(aligned) if aligned else max(divs)


def spp(x, *, max_channels_per_step=64):
    """x: (N, C, H, W). Returns (N, 4C, H, W) = cat([x, p5, p9, p13], dim=1)."""
    N, C, H, W = x.shape
    L = H * W
    TC = _pick_channel_block(C, max_channels_per_step)
    HALO = _P * W                          # rows of halo needed on each side
    OFF = ((HALO + 127) // 128) * 128      # 128-aligned interior offset

    x_flat = x.reshape(N, C, L)            # free row-major merge of (H, W)

    kernel = functools.partial(_spp_kernel, H=H, W=W, TC=TC, OFF=OFF)

    out = pl.pallas_call(
        kernel,
        out_shape=jax.ShapeDtypeStruct((N, 4, C, L), x.dtype),
        grid_spec=pltpu.PrefetchScalarGridSpec(
            num_scalar_prefetch=0,
            grid=(N, C // TC),
            in_specs=[pl.BlockSpec((None, TC, L), lambda n, c: (n, c, 0))],
            out_specs=pl.BlockSpec((None, 4, TC, L), lambda n, c: (n, 0, c, 0)),
            scratch_shapes=[pltpu.VMEM((TC, 2 * OFF + L), x.dtype)],
        ),
        compiler_params=pltpu.CompilerParams(
            dimension_semantics=("parallel", "parallel"),
        ),
    )(x_flat)

    # Free reshape: (N, 4, C, H*W) row-major == torch.cat([x,p5,p9,p13], dim=1).
    return out.reshape(N, 4 * C, H, W)


def _spp_reference(x):
    """Plain-JAX reference using reduce_window (sanity check)."""
    outs = [x]
    for k in KSIZES:
        p = (k - 1) // 2
        pooled = jax.lax.reduce_window(
            x,
            -jnp.inf,
            jax.lax.max,
            window_dimensions=(1, 1, k, k),
            window_strides=(1, 1, 1, 1),
            padding=((0, 0), (0, 0), (p, p), (p, p)),
        )
        outs.append(pooled)
    return jnp.concatenate(outs, axis=1)


if __name__ == "__main__":
    key = jax.random.PRNGKey(0)
    x = jax.random.normal(key, (2, 4, 16, 16), dtype=jnp.float32)

    out = spp(x)
    jax.block_until_ready(out)

    ref = _spp_reference(x)
    assert out.shape == (2, 16, 16, 16), out.shape
    assert jnp.allclose(out, ref, atol=1e-6, rtol=1e-6), "mismatch vs reference"

    print("KERNEL_OK")
</pallas_src>

<mosaic_0001>
module attributes {stable_mosaic.version = 11 : i64} {
  func.func @_spp_kernel(%arg0: i32, %arg1: i32, %arg2: memref<1x4x256xf32, #tpu.memory_space<vmem>>, %arg3: memref<1x4x4x256xf32, #tpu.memory_space<vmem>>, %arg4: memref<4x512xf32, #tpu.memory_space<vmem>>) attributes {dimension_semantics = [#tpu.dimension_semantics<parallel>, #tpu.dimension_semantics<parallel>], iteration_bounds = array<i64: 2, 1>, scalar_prefetch = 0 : i64, scratch_operands = 1 : i64, tpu.core_type = #tpu.core_type<tc>, window_params = [{transform_indices = @transform_0, window_bounds = array<i64: 1, 4, 256>}, {transform_indices = @transform_1, window_bounds = array<i64: 1, 4, 4, 256>}]} {
    %cst = arith.constant 0xFF800000 : f32
    %0 = vector.broadcast %cst : f32 to vector<4x128xf32>
    %c0 = arith.constant 0 : index
    %c0_0 = arith.constant 0 : index
    %1 = vector.load %arg4[%c0, %c0_0] : memref<4x512xf32, #tpu.memory_space<vmem>>, vector<4x128xf32>
    tpu.vector_store %arg4[%c0, %c0_0], %0 {strides = array<i32>} : memref<4x512xf32, #tpu.memory_space<vmem>>, vector<4x128xf32>,
    %cst_1 = arith.constant 0xFF800000 : f32
    %2 = vector.broadcast %cst_1 : f32 to vector<4x128xf32>
    %c0_2 = arith.constant 0 : index
    %c384 = arith.constant 384 : index
    %3 = vector.load %arg4[%c0_2, %c384] : memref<4x512xf32, #tpu.memory_space<vmem>>, vector<4x128xf32>
    tpu.vector_store %arg4[%c0_2, %c384], %2 {strides = array<i32>} : memref<4x512xf32, #tpu.memory_space<vmem>>, vector<4x128xf32>,
    %4 = tpu.iota {dimensions = array<i32: 1>} : vector<4x256xi32>
    %c16_i32 = arith.constant 16 : i32
    %c0_i32 = arith.constant 0 : i32
    %5 = arith.cmpi eq, %c16_i32, %c0_i32 : i32
    %c1_i32 = arith.constant 1 : i32
    %6 = arith.select %5, %c1_i32, %c16_i32 : i32
    %7 = vector.broadcast %6 : i32 to vector<4x256xi32>
    %8 = arith.remsi %4, %7 : vector<4x256xi32>
    %c0_i32_3 = arith.constant 0 : i32
    %9 = vector.broadcast %c0_i32_3 : i32 to vector<4x256xi32>
    %10 = arith.cmpi ne, %8, %9 : vector<4x256xi32>
    %c0_i32_4 = arith.constant 0 : i32
    %11 = vector.broadcast %c0_i32_4 : i32 to vector<4x256xi32>
    %12 = arith.cmpi slt, %8, %11 : vector<4x256xi32>
    %c0_i32_5 = arith.constant 0 : i32
    %13 = arith.cmpi slt, %6, %c0_i32_5 : i32
    %14 = vector.broadcast %13 : i1 to vector<4x256xi1>
    %15 = vector.broadcast %14 : vector<4x256xi1> to vector<4x256xi1>
    %16 = arith.xori %12, %15 : vector<4x256xi1>
    %17 = arith.andi %16, %10 : vector<4x256xi1>
    %18 = vector.broadcast %6 : i32 to vector<4x256xi32>
    %19 = arith.addi %8, %18 : vector<4x256xi32>
    %20 = arith.select %17, %19, %8 : vector<4x256xi1>, vector<4x256xi32>
    %c15_i32 = arith.constant 15 : i32
    %21 = vector.broadcast %c15_i32 : i32 to vector<4x256xi32>
    %22 = arith.cmpi slt, %20, %21 : vector<4x256xi32>
    %c14_i32 = arith.constant 14 : i32
    %23 = vector.broadcast %c14_i32 : i32 to vector<4x256xi32>
    %24 = arith.cmpi slt, %20, %23 : vector<4x256xi32>
    %c1_i32_6 = arith.constant 1 : i32
    %25 = vector.broadcast %c1_i32_6 : i32 to vector<4x256xi32>
    %26 = arith.cmpi sge, %20, %25 : vector<4x256xi32>
    %c2_i32 = arith.constant 2 : i32
    %27 = vector.broadcast %c2_i32 : i32 to vector<4x256xi32>
    %28 = arith.cmpi sge, %20, %27 : vector<4x256xi32>
    %c0_7 = arith.constant 0 : index
    %c0_8 = arith.constant 0 : index
    %c0_9 = arith.constant 0 : index
    %29 = vector.load %arg2[%c0_7, %c0_8, %c0_9] : memref<1x4x256xf32, #tpu.memory_space<vmem>>, vector<1x4x256xf32>
    %30 = vector.shape_cast %29 : vector<1x4x256xf32> to vector<4x256xf32>
    %c0_10 = arith.constant 0 : index
    %c0_11 = arith.constant 0 : index
    %c0_12 = arith.constant 0 : index
    %c0_13 = arith.constant 0 : index
    %31 = vector.load %arg3[%c0_10, %c0_11, %c0_12, %c0_13] : memref<1x4x4x256xf32, #tpu.memory_space<vmem>>, vector<1x1x4x256xf32>
    %32 = vector.shape_cast %31 : vector<1x1x4x256xf32> to vector<4x256xf32>
    %33 = vector.shape_cast %30 : vector<4x256xf32> to vector<1x1x4x256xf32>
    tpu.vector_store %arg3[%c0_10, %c0_11, %c0_12, %c0_13], %33 {strides = array<i32>} : memref<1x4x4x256xf32, #tpu.memory_space<vmem>>, vector<1x1x4x256xf32>,
    %c0_14 = arith.constant 0 : index
    %c128 = arith.constant 128 : index
    %34 = vector.load %arg4[%c0_14, %c128] : memref<4x512xf32, #tpu.memory_space<vmem>>, vector<4x256xf32>
    tpu.vector_store %arg4[%c0_14, %c128], %30 {strides = array<i32>} : memref<4x512xf32, #tpu.memory_space<vmem>>, vector<4x256xf32>,
    %c0_15 = arith.constant 0 : index
    %c129 = arith.constant 129 : index
    %35 = vector.load %arg4[%c0_15, %c129] : memref<4x512xf32, #tpu.memory_space<vmem>>, vector<4x256xf32>
    %c0_16 = arith.constant 0 : index
    %c127 = arith.constant 127 : index
    %36 = vector.load %arg4[%c0_16, %c127] : memref<4x512xf32, #tpu.memory_space<vmem>>, vector<4x256xf32>
    %cst_17 = arith.constant 0xFF800000 : f32
    %37 = vector.broadcast %cst_17 : f32 to vector<4x256xf32>
    %38 = arith.select %22, %35, %37 : vector<4x256xi1>, vector<4x256xf32>
    %39 = arith.maximumf %30, %38 : vector<4x256xf32>
    %cst_18 = arith.constant 0xFF800000 : f32
    %40 = vector.broadcast %cst_18 : f32 to vector<4x256xf32>
    %41 = arith.select %26, %36, %40 : vector<4x256xi1>, vector<4x256xf32>
    %42 = arith.maximumf %39, %41 : vector<4x256xf32>
    %c0_19 = arith.constant 0 : index
    %c130 = arith.constant 130 : index
    %43 = vector.load %arg4[%c0_19, %c130] : memref<4x512xf32, #tpu.memory_space<vmem>>, vector<4x256xf32>
    %c0_20 = arith.constant 0 : index
    %c126 = arith.constant 126 : index
    %44 = vector.load %arg4[%c0_20, %c126] : memref<4x512xf32, #tpu.memory_space<vmem>>, vector<4x256xf32>
    %cst_21 = arith.constant 0xFF800000 : f32
    %45 = vector.broadcast %cst_21 : f32 to vector<4x256xf32>
    %46 = arith.select %24, %43, %45 : vector<4x256xi1>, vector<4x256xf32>
    %47 = arith.maximumf %42, %46 : vector<4x256xf32>
    %cst_22 = arith.constant 0xFF800000 : f32
    %48 = vector.broadcast %cst_22 : f32 to vector<4x256xf32>
    %49 = arith.select %28, %44, %48 : vector<4x256xi1>, vector<4x256xf32>
    %50 = arith.maximumf %47, %49 : vector<4x256xf32>
    %c0_23 = arith.constant 0 : index
    %c128_24 = arith.constant 128 : index
    %51 = vector.load %arg4[%c0_23, %c128_24] : memref<4x512xf32, #tpu.memory_space<vmem>>, vector<4x256xf32>
    tpu.vector_store %arg4[%c0_23, %c128_24], %50 {strides = array<i32>} : memref<4x512xf32, #tpu.memory_space<vmem>>, vector<4x256xf32>,
    %c0_25 = arith.constant 0 : index
    %c144 = arith.constant 144 : index
    %52 = vector.load %arg4[%c0_25, %c144] : memref<4x512xf32, #tpu.memory_space<vmem>>, vector<4x256xf32>
    %53 = arith.maximumf %50, %52 : vector<4x256xf32>
    %c0_26 = arith.constant 0 : index
    %c112 = arith.constant 112 : index
    %54 = vector.load %arg4[%c0_26, %c112] : memref<4x512xf32, #tpu.memory_space<vmem>>, vector<4x256xf32>
    %55 = arith.maximumf %53, %54 : vector<4x256xf32>
    %c0_27 = arith.constant 0 : index
    %c160 = arith.constant 160 : index
    %56 = vector.load %arg4[%c0_27, %c160] : memref<4x512xf32, #tpu.memory_space<vmem>>, vector<4x256xf32>
    %57 = arith.maximumf %55, %56 : vector<4x256xf32>
    %c0_28 = arith.constant 0 : index
    %c96 = arith.constant 96 : index
    %58 = vector.load %arg4[%c0_28, %c96] : memref<4x512xf32, #tpu.memory_space<vmem>>, vector<4x256xf32>
    %59 = arith.maximumf %57, %58 : vector<4x256xf32>
    %c0_29 = arith.constant 0 : index
    %c1 = arith.constant 1 : index
    %c0_30 = arith.constant 0 : index
    %c0_31 = arith.constant 0 : index
    %60 = vector.load %arg3[%c0_29, %c1, %c0_30, %c0_31] : memref<1x4x4x256xf32, #tpu.memory_space<vmem>>, vector<1x1x4x256xf32>
    %61 = vector.shape_cast %60 : vector<1x1x4x256xf32> to vector<4x256xf32>
    %62 = vector.shape_cast %59 : vector<4x256xf32> to vector<1x1x4x256xf32>
    tpu.vector_store %arg3[%c0_29, %c1, %c0_30, %c0_31], %62 {strides = array<i32>} : memref<1x4x4x256xf32, #tpu.memory_space<vmem>>, vector<1x1x4x256xf32>,
    %c0_32 = arith.constant 0 : index
    %c128_33 = arith.constant 128 : index
    %63 = vector.load %arg4[%c0_32, %c128_33] : memref<4x512xf32, #tpu.memory_space<vmem>>, vector<4x256xf32>
    tpu.vector_store %arg4[%c0_32, %c128_33], %59 {strides = array<i32>} : memref<4x512xf32, #tpu.memory_space<vmem>>, vector<4x256xf32>,
    %c0_34 = arith.constant 0 : index
    %c129_35 = arith.constant 129 : index
    %64 = vector.load %arg4[%c0_34, %c129_35] : memref<4x512xf32, #tpu.memory_space<vmem>>, vector<4x256xf32>
    %c0_36 = arith.constant 0 : index
    %c127_37 = arith.constant 127 : index
    %65 = vector.load %arg4[%c0_36, %c127_37] : memref<4x512xf32, #tpu.memory_space<vmem>>, vector<4x256xf32>
    %cst_38 = arith.constant 0xFF800000 : f32
    %66 = vector.broadcast %cst_38 : f32 to vector<4x256xf32>
    %67 = arith.select %22, %64, %66 : vector<4x256xi1>, vector<4x256xf32>
    %68 = arith.maximumf %59, %67 : vector<4x256xf32>
    %cst_39 = arith.constant 0xFF800000 : f32
    %69 = vector.broadcast %cst_39 : f32 to vector<4x256xf32>
    %70 = arith.select %26, %65, %69 : vector<4x256xi1>, vector<4x256xf32>
    %71 = arith.maximumf %68, %70 : vector<4x256xf32>
    %c0_40 = arith.constant 0 : index
    %c130_41 = arith.constant 130 : index
    %72 = vector.load %arg4[%c0_40, %c130_41] : memref<4x512xf32, #tpu.memory_space<vmem>>, vector<4x256xf32>
    %c0_42 = arith.constant 0 : index
    %c126_43 = arith.constant 126 : index
    %73 = vector.load %arg4[%c0_42, %c126_43] : memref<4x512xf32, #tpu.memory_space<vmem>>, vector<4x256xf32>
    %cst_44 = arith.constant 0xFF800000 : f32
    %74 = vector.broadcast %cst_44 : f32 to vector<4x256xf32>
    %75 = arith.select %24, %72, %74 : vector<4x256xi1>, vector<4x256xf32>
    %76 = arith.maximumf %71, %75 : vector<4x256xf32>
    %cst_45 = arith.constant 0xFF800000 : f32
    %77 = vector.broadcast %cst_45 : f32 to vector<4x256xf32>
    %78 = arith.select %28, %73, %77 : vector<4x256xi1>, vector<4x256xf32>
    %79 = arith.maximumf %76, %78 : vector<4x256xf32>
    %c0_46 = arith.constant 0 : index
    %c128_47 = arith.constant 128 : index
    %80 = vector.load %arg4[%c0_46, %c128_47] : memref<4x512xf32, #tpu.memory_space<vmem>>, vector<4x256xf32>
    tpu.vector_store %arg4[%c0_46, %c128_47], %79 {strides = array<i32>} : memref<4x512xf32, #tpu.memory_space<vmem>>, vector<4x256xf32>,
    %c0_48 = arith.constant 0 : index
    %c144_49 = arith.constant 144 : index
    %81 = vector.load %arg4[%c0_48, %c144_49] : memref<4x512xf32, #tpu.memory_space<vmem>>, vector<4x256xf32>
    %82 = arith.maximumf %79, %81 : vector<4x256xf32>
    %c0_50 = arith.constant 0 : index
    %c112_51 = arith.constant 112 : index
    %83 = vector.load %arg4[%c0_50, %c112_51] : memref<4x512xf32, #tpu.memory_space<vmem>>, vector<4x256xf32>
    %84 = arith.maximumf %82, %83 : vector<4x256xf32>
    %c0_52 = arith.constant 0 : index
    %c160_53 = arith.constant 160 : index
    %85 = vector.load %arg4[%c0_52, %c160_53] : memref<4x512xf32, #tpu.memory_space<vmem>>, vector<4x256xf32>
    %86 = arith.maximumf %84, %85 : vector<4x256xf32>
    %c0_54 = arith.constant 0 : index
    %c96_55 = arith.constant 96 : index
    %87 = vector.load %arg4[%c0_54, %c96_55] : memref<4x512xf32, #tpu.memory_space<vmem>>, vector<4x256xf32>
    %88 = arith.maximumf %86, %87 : vector<4x256xf32>
    %c0_56 = arith.constant 0 : index
    %c2 = arith.constant 2 : index
    %c0_57 = arith.constant 0 : index
    %c0_58 = arith.constant 0 : index
    %89 = vector.load %arg3[%c0_56, %c2, %c0_57, %c0_58] : memref<1x4x4x256xf32, #tpu.memory_space<vmem>>, vector<1x1x4x256xf32>
    %90 = vector.shape_cast %89 : vector<1x1x4x256xf32> to vector<4x256xf32>
    %91 = vector.shape_cast %88 : vector<4x256xf32> to vector<1x1x4x256xf32>
    tpu.vector_store %arg3[%c0_56, %c2, %c0_57, %c0_58], %91 {strides = array<i32>} : memref<1x4x4x256xf32, #tpu.memory_space<vmem>>, vector<1x1x4x256xf32>,
    %c0_59 = arith.constant 0 : index
    %c128_60 = arith.constant 128 : index
    %92 = vector.load %arg4[%c0_59, %c128_60] : memref<4x512xf32, #tpu.memory_space<vmem>>, vector<4x256xf32>
    tpu.vector_store %arg4[%c0_59, %c128_60], %88 {strides = array<i32>} : memref<4x512xf32, #tpu.memory_space<vmem>>, vector<4x256xf32>,
    %c0_61 = arith.constant 0 : index
    %c129_62 = arith.constant 129 : index
    %93 = vector.load %arg4[%c0_61, %c129_62] : memref<4x512xf32, #tpu.memory_space<vmem>>, vector<4x256xf32>
    %c0_63 = arith.constant 0 : index
    %c127_64 = arith.constant 127 : index
    %94 = vector.load %arg4[%c0_63, %c127_64] : memref<4x512xf32, #tpu.memory_space<vmem>>, vector<4x256xf32>
    %cst_65 = arith.constant 0xFF800000 : f32
    %95 = vector.broadcast %cst_65 : f32 to vector<4x256xf32>
    %96 = arith.select %22, %93, %95 : vector<4x256xi1>, vector<4x256xf32>
    %97 = arith.maximumf %88, %96 : vector<4x256xf32>
    %cst_66 = arith.constant 0xFF800000 : f32
    %98 = vector.broadcast %cst_66 : f32 to vector<4x256xf32>
    %99 = arith.select %26, %94, %98 : vector<4x256xi1>, vector<4x256xf32>
    %100 = arith.maximumf %97, %99 : vector<4x256xf32>
    %c0_67 = arith.constant 0 : index
    %c130_68 = arith.constant 130 : index
    %101 = vector.load %arg4[%c0_67, %c130_68] : memref<4x512xf32, #tpu.memory_space<vmem>>, vector<4x256xf32>
    %c0_69 = arith.constant 0 : index
    %c126_70 = arith.constant 126 : index
    %102 = vector.load %arg4[%c0_69, %c126_70] : memref<4x512xf32, #tpu.memory_space<vmem>>, vector<4x256xf32>
    %cst_71 = arith.constant 0xFF800000 : f32
    %103 = vector.broadcast %cst_71 : f32 to vector<4x256xf32>
    %104 = arith.select %24, %101, %103 : vector<4x256xi1>, vector<4x256xf32>
    %105 = arith.maximumf %100, %104 : vector<4x256xf32>
    %cst_72 = arith.constant 0xFF800000 : f32
    %106 = vector.broadcast %cst_72 : f32 to vector<4x256xf32>
    %107 = arith.select %28, %102, %106 : vector<4x256xi1>, vector<4x256xf32>
    %108 = arith.maximumf %105, %107 : vector<4x256xf32>
    %c0_73 = arith.constant 0 : index
    %c128_74 = arith.constant 128 : index
    %109 = vector.load %arg4[%c0_73, %c128_74] : memref<4x512xf32, #tpu.memory_space<vmem>>, vector<4x256xf32>
    tpu.vector_store %arg4[%c0_73, %c128_74], %108 {strides = array<i32>} : memref<4x512xf32, #tpu.memory_space<vmem>>, vector<4x256xf32>,
    %c0_75 = arith.constant 0 : index
    %c144_76 = arith.constant 144 : index
    %110 = vector.load %arg4[%c0_75, %c144_76] : memref<4x512xf32, #tpu.memory_space<vmem>>, vector<4x256xf32>
    %111 = arith.maximumf %108, %110 : vector<4x256xf32>
    %c0_77 = arith.constant 0 : index
    %c112_78 = arith.constant 112 : index
    %112 = vector.load %arg4[%c0_77, %c112_78] : memref<4x512xf32, #tpu.memory_space<vmem>>, vector<4x256xf32>
    %113 = arith.maximumf %111, %112 : vector<4x256xf32>
    %c0_79 = arith.constant 0 : index
    %c160_80 = arith.constant 160 : index
    %114 = vector.load %arg4[%c0_79, %c160_80] : memref<4x512xf32, #tpu.memory_space<vmem>>, vector<4x256xf32>
    %115 = arith.maximumf %113, %114 : vector<4x256xf32>
    %c0_81 = arith.constant 0 : index
    %c96_82 = arith.constant 96 : index
    %116 = vector.load %arg4[%c0_81, %c96_82] : memref<4x512xf32, #tpu.memory_space<vmem>>, vector<4x256xf32>
    %117 = arith.maximumf %115, %116 : vector<4x256xf32>
    %c0_83 = arith.constant 0 : index
    %c3 = arith.constant 3 : index
    %c0_84 = arith.constant 0 : index
    %c0_85 = arith.constant 0 : index
    %118 = vector.load %arg3[%c0_83, %c3, %c0_84, %c0_85] : memref<1x4x4x256xf32, #tpu.memory_space<vmem>>, vector<1x1x4x256xf32>
    %119 = vector.shape_cast %118 : vector<1x1x4x256xf32> to vector<4x256xf32>
    %120 = vector.shape_cast %117 : vector<4x256xf32> to vector<1x1x4x256xf32>
    tpu.vector_store %arg3[%c0_83, %c3, %c0_84, %c0_85], %120 {strides = array<i32>} : memref<1x4x4x256xf32, #tpu.memory_space<vmem>>, vector<1x1x4x256xf32>,
    return
  }
  func.func @transform_0(%arg0: i32, %arg1: i32) -> (i32, i32, i32) {
    %c0_i32 = arith.constant 0 : i32
    %c0_i32_0 = arith.constant 0 : i32
    return %arg0, %arg1, %c0_i32 : i32, i32, i32
  }
  func.func @transform_1(%arg0: i32, %arg1: i32) -> (i32, i32, i32, i32) {
    %c0_i32 = arith.constant 0 : i32
    %c0_i32_0 = arith.constant 0 : i32
    %c0_i32_1 = arith.constant 0 : i32
    return %arg0, %c0_i32, %arg1, %c0_i32_0 : i32, i32, i32, i32
  }
}

</mosaic_0001>

<llo_original>
// kernel: tpu_custom_call.1
$region0: #{tpu_custom_call.1}
  #allocation0 [shape = 'u32[]', space=smem, size = 0x4, offset = 0x4, fixed_abs, tag = 'smem constant byte address 0x4 - core index']
  #allocation1 [shape = 'u32[72,128]{1,0:T(1,128)}', space=vmem, size = 0x9000, scoped, tag = 'internal scratch']
  #allocation2 [shape = 'f32[4,512]{1,0:T(4,128)}', space=vmem, size = 0x2000, scoped, tag = 'scratch operand']
  %s0 = inlined_call_operand.hbm [shape: f32[2,4,256], index: 0, kind: input, shape index: {}]
  %s1 = inlined_call_operand.hbm [shape: f32[2,4,4,256], index: 1, kind: output, shape index: {}]
  %s2 = sld [smem:[#allocation0]]
  $region41: #{tpu_custom_call.1} parent=0
    _
  %s4 = ssub.s32 1, %s2
  %s5 = scalar_select 0, %s4, %s2
  $region1: #{tpu_custom_call.1} parent=0
    #allocation3 [shape = 'u8[8192]{0}', space=vmem, size = 0x2000, scoped, tag = 'input window, operand 0']
    #allocation4 [shape = 's32[2]{0}', space=sflag, size = 0x8, scoped, tag = 'scoped memory for tpu_custom_call.1']
    #allocation5 [shape = 's32[2]{0}', space=sflag, size = 0x8, scoped, tag = 'scoped memory for tpu_custom_call.1']
    #allocation6 [shape = 'u8[32768]{0}', space=vmem, size = 0x8000, scoped, tag = 'output window, operand 0']
    %6 = vsyncpa [#allocation4], 0
    %s7 = scalar_lea.sflag [#allocation4], 1
    %8 = vsyncpa %s7, 0
    %9 = vsyncpa [#allocation5], 0
    %s10 = scalar_lea.sflag [#allocation5], 1
    %11 = vsyncpa %s10, 0
    loop: start=0, step=1, limit=4
    $region2: #{tpu_custom_call.1} parent=1 // loop_pre_header
      _
    $region3: #{tpu_custom_call.1} parent=1 // loop_header
      %s13 = sphi 0, %s17
      %p14 = scmp.ge.s32.totalorder %s13, 4
      %s20 = sphi 0, %s32
      %s21 = sphi 0, %s28
      %s22 = sphi 0, %s20
      %s23 = sphi 0, %s21
      %s24 = sphi 0, %s22
      %s25 = sphi 0, %s23
      %s37 = sphi 0, %s39
      %s40 = sphi 0, %s37
      %s41 = sphi 0, %s40
      %s57 = sphi 0, %s41
      %s65 = sphi 0, %s67
      %s68 = sphi 0, %s65
      %s69 = sphi 0, %s68
      %s85 = sphi 0, %s69
    $region4: #{tpu_custom_call.1} parent=1 // loop_header_branch
      %16 = sbr.rel (%p14) target = $region8
    $region5: #{tpu_custom_call.1} parent=1 // loop_body
      %s18 = ssub.s32 %s13, 1
      %s19 = ssub.s32 %s13, 2
      %s26 = sadd.s32 1, %s21
      %p27 = scmp.ge.s32.totalorder %s26, 1
      %s28 = scalar_select %p27, 0, %s26
      %s29 = sadd.s32 1, %s20
      %s30 = scalar_select %p27, %s29, %s20
      %p31 = scmp.ge.s32.totalorder %s30, 2
      %s32 = scalar_select %p31, 0, %s30
      %s33 = ssub.s32 %s20, %s32
      %s34 = ssub.s32 %s21, %s28
      %s35 = sor.u32 %s33, %s34
      %p36 = scmp.eq.s32.totalorder %s35, 0
      %s38 = sadd.s32 %s37, 1
      %s39 = scalar_select %p36, %s37, %s38
      %p42 = pneg %p36
      %p43 = scmp.eq.s32.totalorder %s13, 1
      %p44 = por %p42, %p43
      %p45 = scmp.ne.s32.totalorder %s37, %s40
      %p46 = scmp.eq.s32.totalorder %s13, 0
      %p47 = por %p45, %p46
      %p48 = scmp.ne.s32.totalorder %s37, %s40
      %p49 = scmp.eq.s32.totalorder %s18, 1
      %p50 = por %p48, %p49
      %p51 = scmp.ne.s32.totalorder %s40, %s41
      %p52 = scmp.eq.s32.totalorder %s18, 0
      %p53 = por %p51, %p52
      %p54 = scmp.ne.s32.totalorder %s40, %s41
      %p55 = scmp.eq.s32.totalorder %s19, 1
      %p56 = por %p54, %p55
      %p58 = scmp.ne.s32.totalorder %s41, %s57
      %p59 = scmp.eq.s32.totalorder %s19, 0
      %p60 = por %p58, %p59
      %s61 = ssub.s32 %s20, %s32
      %s62 = ssub.s32 %s21, %s28
      %s63 = sor.u32 %s61, %s62
      %p64 = scmp.eq.s32.totalorder %s63, 0
      %s66 = sadd.s32 %s65, 1
      %s67 = scalar_select %p64, %s65, %s66
      %p70 = pneg %p64
      %p71 = scmp.eq.s32.totalorder %s13, 1
      %p72 = por %p70, %p71
      %p73 = scmp.ne.s32.totalorder %s65, %s68
      %p74 = scmp.eq.s32.totalorder %s13, 0
      %p75 = por %p73, %p74
      %p76 = scmp.ne.s32.totalorder %s65, %s68
      %p77 = scmp.eq.s32.totalorder %s18, 1
      %p78 = por %p76, %p77
      %p79 = scmp.ne.s32.totalorder %s68, %s69
      %p80 = scmp.eq.s32.totalorder %s18, 0
      %p81 = por %p79, %p80
      %p82 = scmp.ne.s32.totalorder %s68, %s69
      %p83 = scmp.eq.s32.totalorder %s19, 1
      %p84 = por %p82, %p83
      %p86 = scmp.ne.s32.totalorder %s69, %s85
      %p87 = scmp.eq.s32.totalorder %s19, 0
      %p88 = por %p86, %p87
      %p89 = scmp.le.s32.totalorder 1, %s13
      %p90 = scmp.lt.s32.totalorder %s13, 3
      %p91 = pnand %p89, %p90
      %p92 = pneg %p91
      // Predicated region
      $region9: #{tpu_custom_call.1} parent=5 // pred_check
        _
      $region10: #{tpu_custom_call.1} parent=5 // pred_check_branch
        %94 = sbr.rel (%p91) target = $region12
      $region11: #{tpu_custom_call.1} parent=5 // pred_region
        %s95 = ssub.s32 %s13, 1
      $region12: #{tpu_custom_call.1} parent=5 // pred_fallthru
        _
      %p96 = scmp.lt.s32.totalorder %s13, 2
      // Predicated region
      $region13: #{tpu_custom_call.1} parent=5 // pred_check
        %p97 = pneg %p96
      $region14: #{tpu_custom_call.1} parent=5 // pred_check_branch
        %99 = sbr.rel (%p97) target = $region16
      $region15: #{tpu_custom_call.1} parent=5 // pred_region
        // Predicated region
        $region17: #{tpu_custom_call.1} parent=15 // pred_check
          %p100 = pneg %p47
        $region18: #{tpu_custom_call.1} parent=15 // pred_check_branch
          %102 = sbr.rel (%p100) target = $region20
        $region19: #{tpu_custom_call.1} parent=15 // pred_region
          %s103 = sand.u32 %s37, 1
          %s104 = scalar_lea.sflag [#allocation4], %s103
          %s105 = sand.u32 %s37, 1
          %s106 = smul.addr %s105, 8
          %s107 = scalar_lea.vmem [#allocation3], %s106
          %109 = vsyncadd %s104, 0
          %s110 = smul.addr %s21, 2
          %s111 = smul.addr %s20, 2
          %s112 = sadd.s32 %s110, %s111
          %s113 = smul.addr %s112, 4
          %s114 = scalar_lea.hbm %s0, %s113
          %s116 = sshll.u32 %s114, 4
          %s117 = int_to_ptr.hbm [resolvable:$true] %s116
          %s118 = sshll.u32 %s107, 4
          %s119 = int_to_ptr.vmem [resolvable:$true] %s118
          %121 = dma.hbm_to_vmem [thread:$0]  %s117, 128, %s119, %s104
        $region20: #{tpu_custom_call.1} parent=15 // pred_fallthru
          _
      $region16: #{tpu_custom_call.1} parent=5 // pred_fallthru
        _
      %p122 = scmp.le.s32.totalorder 1, %s13
      %p123 = scmp.lt.s32.totalorder %s13, 3
      %p124 = pnand %p122, %p123
      %p125 = pneg %p124
      // Predicated region
      $region21: #{tpu_custom_call.1} parent=5 // pred_check
        _
      $region22: #{tpu_custom_call.1} parent=5 // pred_check_branch
        %127 = sbr.rel (%p124) target = $region24
      $region23: #{tpu_custom_call.1} parent=5 // pred_region
        %s128 = ssub.s32 %s13, 1
        %s129 = sand.u32 %s40, 1
        %s130 = scalar_lea.sflag [#allocation4], %s129
        %s131 = sand.u32 %s40, 1
        %s132 = smul.addr %s131, 8
        %s133 = scalar_lea.vmem [#allocation3], %s132
        // Predicated region
        $region25: #{tpu_custom_call.1} parent=23 // pred_check
          %p134 = pneg %p53
        $region26: #{tpu_custom_call.1} parent=23 // pred_check_branch
          %136 = sbr.rel (%p134) target = $region28
        $region27: #{tpu_custom_call.1} parent=23 // pred_region
          %138 = dma.done %s130, 128
        $region28: #{tpu_custom_call.1} parent=23 // pred_fallthru
          _
        %s139 = sand.u32 %s40, 1
        %s140 = scalar_lea.sflag [#allocation4], %s139
        %s141 = sand.u32 %s40, 1
        %s142 = smul.addr %s141, 8
        %s143 = scalar_lea.vmem [#allocation3], %s142
        %p144 = pneg %p53
        %p145 = pneg %p50
        %p146 = pneg %p81
        %p147 = pneg %p78
        %s148 = sand.u32 %s68, 1
        %s149 = scalar_lea.sflag [#allocation5], %s148
        %s150 = sand.u32 %s68, 1
        %s151 = smul.addr %s150, 32
        %s152 = scalar_lea.vmem [#allocation6], %s151
        %153 = vst [vmem:[#allocation2] sm:$0xf] -inf
        %154 = vst [vmem:[#allocation2 + $0xc] sm:$0xf] -inf
        %v155 = vlaneseq
        %v156 = vand.u32 %v155, 127
        %v157 = vadd.s32 %v156, 128
        %vm158 = vcmp.lt.s32.totalorder %v156, 0
        %v159 = vsub.s32 0, %v156
        %v160 = vsel %vm158, %v159, %v156
        %v161 = vshrl.u32 %v160, 4
        %v162 = vand.u32 %v160, 15
        %v163 = vsub.s32 0, %v162
        %v164 = vsel %vm158, %v163, %v162
        %vm165 = vcmp.lt.s32.totalorder %v157, 0
        %v166 = vsub.s32 0, %v157
        %v167 = vsel %vm165, %v166, %v157
        %v168 = vshrl.u32 %v167, 4
        %v169 = vand.u32 %v167, 15
        %v170 = vsub.s32 0, %v169
        %v171 = vsel %vm165, %v170, %v169
        %vm172 = vcmp.ne.s32.totalorder %v164, 0
        %vm173 = vcmp.ne.s32.totalorder %v171, 0
        %vm174 = vcmp.lt.s32.totalorder %v164, 0
        %vm175 = vcmp.lt.s32.totalorder %v171, 0
        %vm176 = vmand %vm174, %vm172
        %vm177 = vmand %vm175, %vm173
        %v178 = vadd.s32 %v164, 16
        %v179 = vadd.s32 %v171, 16
        %v180 = vsel %vm176, %v178, %v164
        %v181 = vsel %vm177, %v179, %v171
        %vm182 = vcmp.lt.s32.totalorder %v180, 15
        %vm183 = vcmp.lt.s32.totalorder %v181, 15
        %vm184 = vcmp.lt.s32.totalorder %v180, 14
        %vm185 = vcmp.lt.s32.totalorder %v181, 14
        %vm186 = vcmp.ge.s32.totalorder %v180, 1
        %vm187 = vcmp.ge.s32.totalorder %v181, 1
        %vm188 = vcmp.ge.s32.totalorder %v180, 2
        %vm189 = vcmp.ge.s32.totalorder %v181, 2
        %v190 = vld [vmem:[%s133] sm:$0xff]
        %191 = vst [vmem:[%s152] sm:$0xff] %v190
        %192 = vst [vmem:[#allocation2 + $0x4] sm:$0xff] %v190
        %v193 = vld [vmem:[#allocation2 + $0x4] sm:$0xff]
        %v194 = vld [vmem:[#allocation2 + $0xc] sm:$0xf]
        %v195 = vld [vmem:[#allocation2] sm:$0xff]
        %v196 = vld [vmem:[#allocation2 + $0x8] sm:$0xf]
        %199 = vst [vmem:[#allocation1] ss:$2 sm:$0xff] %v193
        %s200 = scalar_lea.vmem [#allocation1], 16
        %201 = vst [vmem:[%s200] ss:$2 sm:$0xff] %v194
        %v202 = vld.sshfl [vmem:[#allocation1] sm:$0xff pattern:$0x75316420]
        %v203 = vld.sshfl [vmem:[#allocation1 + $0x8] sm:$0xff pattern:$0x75316420]
        %v204 = vld.sshfl [vmem:[#allocation1 + $0x10] sm:$0xff pattern:$0x75316420]
        %205 = vrot.lane.b32.xlu0 %v202, 127
        %v206 = vpop.permute.xlu0 %205
        %207 = vrot.lane.b32.xlu0 %v203, 127
        %v208 = vpop.permute.xlu0 %207
        %209 = vrot.lane.b32.xlu0 %v204, 127
        %v210 = vpop.permute.xlu0 %209
        %vm211 = vcmask 1039360
        %v212 = vsel %vm211, %v206, %v208
        %v213 = vsel %vm211, %v208, %v210
        %v216 = vsel %vm182, %v212, -inf
        %v217 = vsel %vm183, %v213, -inf
        %v220 = vrot.slane %v217, 4
        %vm221 = vcmask 1043456
        %v222 = vsel %vm221, %v216, %v220
        %v224 = vmax.f32 %v190, %v222
        %227 = vst [vmem:[#allocation1] ss:$2 sm:$0xff] %v195
        %s228 = scalar_lea.vmem [#allocation1], 16
        %229 = vst [vmem:[%s228] ss:$2 sm:$0xff] %v196
        %v230 = vld.sshfl [vmem:[#allocation1] sm:$0xff pattern:$0x75316420]
        %v231 = vld.sshfl [vmem:[#allocation1 + $0x8] sm:$0xff pattern:$0x75316420]
        %v232 = vld.sshfl [vmem:[#allocation1 + $0x10] sm:$0xff pattern:$0x75316420]
        %233 = vrot.lane.b32.xlu0 %v230, 1
        %v234 = vpop.permute.xlu0 %233
        %235 = vrot.lane.b32.xlu0 %v231, 1
        %v236 = vpop.permute.xlu0 %235
        %237 = vrot.lane.b32.xlu0 %v232, 1
        %v238 = vpop.permute.xlu0 %237
        %vm239 = vcmask 7168
        %v240 = vsel %vm239, %v234, %v236
        %v241 = vsel %vm239, %v236, %v238
        %v244 = vsel %vm186, %v240, -inf
        %v245 = vsel %vm187, %v241, -inf
        %v248 = vrot.slane %v245, 4
        %v249 = vsel %vm221, %v244, %v248
        %v251 = vmax.f32 %v224, %v249
        %v252 = vld [vmem:[#allocation2 + $0x4] sm:$0xff]
        %v253 = vld [vmem:[#allocation2 + $0xc] sm:$0xf]
        %v254 = vld [vmem:[#allocation2] sm:$0xff]
        %v255 = vld [vmem:[#allocation2 + $0x8] sm:$0xf]
        %258 = vst [vmem:[#allocation1] ss:$2 sm:$0xff] %v252
        %s259 = scalar_lea.vmem [#allocation1], 16
        %260 = vst [vmem:[%s259] ss:$2 sm:$0xff] %v253
        %v261 = vld.sshfl [vmem:[#allocation1] sm:$0xff pattern:$0x75316420]
        %v262 = vld.sshfl [vmem:[#allocation1 + $0x8] sm:$0xff pattern:$0x75316420]
        %v263 = vld.sshfl [vmem:[#allocation1 + $0x10] sm:$0xff pattern:$0x75316420]
        %264 = vrot.lane.b32.xlu0 %v261, 126
        %v265 = vpop.permute.xlu0 %264
        %266 = vrot.lane.b32.xlu0 %v262, 126
        %v267 = vpop.permute.xlu0 %266
        %268 = vrot.lane.b32.xlu0 %v263, 126
        %v269 = vpop.permute.xlu0 %268
        %vm270 = vcmask 1031168
        %v271 = vsel %vm270, %v265, %v267
        %v272 = vsel %vm270, %v267, %v269
        %v275 = vsel %vm184, %v271, -inf
        %v276 = vsel %vm185, %v272, -inf
        %v279 = vrot.slane %v276, 4
        %v280 = vsel %vm221, %v275, %v279
        %v282 = vmax.f32 %v251, %v280
        %285 = vst [vmem:[#allocation1] ss:$2 sm:$0xff] %v254
        %s286 = scalar_lea.vmem [#allocation1], 16
        %287 = vst [vmem:[%s286] ss:$2 sm:$0xff] %v255
        %v288 = vld.sshfl [vmem:[#allocation1] sm:$0xff pattern:$0x75316420]
        %v289 = vld.sshfl [vmem:[#allocation1 + $0x8] sm:$0xff pattern:$0x75316420]
        %v290 = vld.sshfl [vmem:[#allocation1 + $0x10] sm:$0xff pattern:$0x75316420]
        %291 = vrot.lane.b32.xlu0 %v288, 2
        %v292 = vpop.permute.xlu0 %291
        %293 = vrot.lane.b32.xlu0 %v289, 2
        %v294 = vpop.permute.xlu0 %293
        %295 = vrot.lane.b32.xlu0 %v290, 2
        %v296 = vpop.permute.xlu0 %295
        %vm297 = vcmask 15360
        %v298 = vsel %vm297, %v292, %v294
        %v299 = vsel %vm297, %v294, %v296
        %v302 = vsel %vm188, %v298, -inf
        %v303 = vsel %vm189, %v299, -inf
        %v306 = vrot.slane %v303, 4
        %v307 = vsel %vm221, %v302, %v306
        %v309 = vmax.f32 %v282, %v307
        %310 = vst [vmem:[#allocation2 + $0x4] sm:$0xff] %v309
        %v311 = vld [vmem:[#allocation2 + $0x4] sm:$0xff]
        %v312 = vld [vmem:[#allocation2 + $0xc] sm:$0xf]
        %315 = vrot.lane.b32.xlu0 %v311, 112
        %v316 = vpop.permute.xlu0 %315
        %317 = vrot.lane.b32.xlu0 %v312, 112
        %v318 = vpop.permute.xlu0 %317
        %v319 = vrot.slane %v316, 4
        %v320 = vrot.slane %v318, 4
        %v321 = vsel %vm221, %v319, %v320
        %vm322 = vcmask 916480
        %v323 = vsel %vm322, %v316, %v321
        %v325 = vmax.f32 %v309, %v323
        %v326 = vld [vmem:[#allocation2] sm:$0xff]
        %v327 = vld [vmem:[#allocation2 + $0x8] sm:$0xf]
        %330 = vrot.lane.b32.xlu0 %v326, 16
        %v331 = vpop.permute.xlu0 %330
        %332 = vrot.lane.b32.xlu0 %v327, 16
        %v333 = vpop.permute.xlu0 %332
        %v334 = vrot.slane %v331, 4
        %v335 = vrot.slane %v333, 4
        %v336 = vsel %vm221, %v334, %v335
        %vm337 = vcmask 130048
        %v338 = vsel %vm337, %v331, %v336
        %v340 = vmax.f32 %v325, %v338
        %341 = vrot.lane.b32.xlu0 %v311, 96
        %v342 = vpop.permute.xlu0 %341
        %343 = vrot.lane.b32.xlu0 %v312, 96
        %v344 = vpop.permute.xlu0 %343
        %v345 = vrot.slane %v342, 4
        %v346 = vrot.slane %v344, 4
        %v347 = vsel %vm221, %v345, %v346
        %vm348 = vcmask 785408
        %v349 = vsel %vm348, %v342, %v347
        %v351 = vmax.f32 %v340, %v349
        %352 = vrot.lane.b32.xlu0 %v326, 32
        %v353 = vpop.permute.xlu0 %352
        %354 = vrot.lane.b32.xlu0 %v327, 32
        %v355 = vpop.permute.xlu0 %354
        %v356 = vrot.slane %v353, 4
        %v357 = vrot.slane %v355, 4
        %v358 = vsel %vm221, %v356, %v357
        %vm359 = vcmask 261120
        %v360 = vsel %vm359, %v353, %v358
        %v362 = vmax.f32 %v351, %v360
        %s363 = scalar_lea.vmem %s152, 8 [#allocation6]
        %364 = vst [vmem:[%s363] sm:$0xff] %v362
        %365 = vst [vmem:[#allocation2 + $0x4] sm:$0xff] %v362
        %v366 = vld [vmem:[#allocation2 + $0x4] sm:$0xff]
        %v367 = vld [vmem:[#allocation2 + $0xc] sm:$0xf]
        %v368 = vld [vmem:[#allocation2] sm:$0xff]
        %v369 = vld [vmem:[#allocation2 + $0x8] sm:$0xf]
        %372 = vst [vmem:[#allocation1] ss:$2 sm:$0xff] %v366
        %s373 = scalar_lea.vmem [#allocation1], 16
        %374 = vst [vmem:[%s373] ss:$2 sm:$0xff] %v367
        %v375 = vld.sshfl [vmem:[#allocation1] sm:$0xff pattern:$0x75316420]
        %v376 = vld.sshfl [vmem:[#allocation1 + $0x8] sm:$0xff pattern:$0x75316420]
        %v377 = vld.sshfl [vmem:[#allocation1 + $0x10] sm:$0xff pattern:$0x75316420]
        %378 = vrot.lane.b32.xlu0 %v375, 127
        %v379 = vpop.permute.xlu0 %378
        %380 = vrot.lane.b32.xlu0 %v376, 127
        %v381 = vpop.permute.xlu0 %380
        %382 = vrot.lane.b32.xlu0 %v377, 127
        %v383 = vpop.permute.xlu0 %382
        %v384 = vsel %vm211, %v379, %v381
        %v385 = vsel %vm211, %v381, %v383
        %v388 = vsel %vm182, %v384, -inf
        %v389 = vsel %vm183, %v385, -inf
        %v392 = vrot.slane %v389, 4
        %v393 = vsel %vm221, %v388, %v392
        %v395 = vmax.f32 %v362, %v393
        %398 = vst [vmem:[#allocation1] ss:$2 sm:$0xff] %v368
        %s399 = scalar_lea.vmem [#allocation1], 16
        %400 = vst [vmem:[%s399] ss:$2 sm:$0xff] %v369
        %v401 = vld.sshfl [vmem:[#allocation1] sm:$0xff pattern:$0x75316420]
        %v402 = vld.sshfl [vmem:[#allocation1 + $0x8] sm:$0xff pattern:$0x75316420]
        %v403 = vld.sshfl [vmem:[#allocation1 + $0x10] sm:$0xff pattern:$0x75316420]
        %404 = vrot.lane.b32.xlu0 %v401, 1
        %v405 = vpop.permute.xlu0 %404
        %406 = vrot.lane.b32.xlu0 %v402, 1
        %v407 = vpop.permute.xlu0 %406
        %408 = vrot.lane.b32.xlu0 %v403, 1
        %v409 = vpop.permute.xlu0 %408
        %v410 = vsel %vm239, %v405, %v407
        %v411 = vsel %vm239, %v407, %v409
        %v414 = vsel %vm186, %v410, -inf
        %v415 = vsel %vm187, %v411, -inf
        %v418 = vrot.slane %v415, 4
        %v419 = vsel %vm221, %v414, %v418
        %v421 = vmax.f32 %v395, %v419
        %v422 = vld [vmem:[#allocation2 + $0x4] sm:$0xff]
        %v423 = vld [vmem:[#allocation2 + $0xc] sm:$0xf]
        %v424 = vld [vmem:[#allocation2] sm:$0xff]
        %v425 = vld [vmem:[#allocation2 + $0x8] sm:$0xf]
        %428 = vst [vmem:[#allocation1] ss:$2 sm:$0xff] %v422
        %s429 = scalar_lea.vmem [#allocation1], 16
        %430 = vst [vmem:[%s429] ss:$2 sm:$0xff] %v423
        %v431 = vld.sshfl [vmem:[#allocation1] sm:$0xff pattern:$0x75316420]
        %v432 = vld.sshfl [vmem:[#allocation1 + $0x8] sm:$0xff pattern:$0x75316420]
        %v433 = vld.sshfl [vmem:[#allocation1 + $0x10] sm:$0xff pattern:$0x75316420]
        %434 = vrot.lane.b32.xlu0 %v431, 126
        %v435 = vpop.permute.xlu0 %434
        %436 = vrot.lane.b32.xlu0 %v432, 126
        %v437 = vpop.permute.xlu0 %436
        %438 = vrot.lane.b32.xlu0 %v433, 126
        %v439 = vpop.permute.xlu0 %438
        %v440 = vsel %vm270, %v435, %v437
        %v441 = vsel %vm270, %v437, %v439
        %v444 = vsel %vm184, %v440, -inf
        %v445 = vsel %vm185, %v441, -inf
        %v448 = vrot.slane %v445, 4
        %v449 = vsel %vm221, %v444, %v448
        %v451 = vmax.f32 %v421, %v449
        %454 = vst [vmem:[#allocation1] ss:$2 sm:$0xff] %v424
        %s455 = scalar_lea.vmem [#allocation1], 16
        %456 = vst [vmem:[%s455] ss:$2 sm:$0xff] %v425
        %v457 = vld.sshfl [vmem:[#allocation1] sm:$0xff pattern:$0x75316420]
        %v458 = vld.sshfl [vmem:[#allocation1 + $0x8] sm:$0xff pattern:$0x75316420]
        %v459 = vld.sshfl [vmem:[#allocation1 + $0x10] sm:$0xff pattern:$0x75316420]
        %460 = vrot.lane.b32.xlu0 %v457, 2
        %v461 = vpop.permute.xlu0 %460
        %462 = vrot.lane.b32.xlu0 %v458, 2
        %v463 = vpop.permute.xlu0 %462
        %464 = vrot.lane.b32.xlu0 %v459, 2
        %v465 = vpop.permute.xlu0 %464
        %v466 = vsel %vm297, %v461, %v463
        %v467 = vsel %vm297, %v463, %v465
        %v470 = vsel %vm188, %v466, -inf
        %v471 = vsel %vm189, %v467, -inf
        %v474 = vrot.slane %v471, 4
        %v475 = vsel %vm221, %v470, %v474
        %v477 = vmax.f32 %v451, %v475
        %478 = vst [vmem:[#allocation2 + $0x4] sm:$0xff] %v477
        %v479 = vld [vmem:[#allocation2 + $0x4] sm:$0xff]
        %v480 = vld [vmem:[#allocation2 + $0xc] sm:$0xf]
        %483 = vrot.lane.b32.xlu0 %v479, 112
        %v484 = vpop.permute.xlu0 %483
        %485 = vrot.lane.b32.xlu0 %v480, 112
        %v486 = vpop.permute.xlu0 %485
        %v487 = vrot.slane %v484, 4
        %v488 = vrot.slane %v486, 4
        %v489 = vsel %vm221, %v487, %v488
        %v490 = vsel %vm322, %v484, %v489
        %v492 = vmax.f32 %v477, %v490
        %v493 = vld [vmem:[#allocation2] sm:$0xff]
        %v494 = vld [vmem:[#allocation2 + $0x8] sm:$0xf]
        %497 = vrot.lane.b32.xlu0 %v493, 16
        %v498 = vpop.permute.xlu0 %497
        %499 = vrot.lane.b32.xlu0 %v494, 16
        %v500 = vpop.permute.xlu0 %499
        %v501 = vrot.slane %v498, 4
        %v502 = vrot.slane %v500, 4
        %v503 = vsel %vm221, %v501, %v502
        %v504 = vsel %vm337, %v498, %v503
        %v506 = vmax.f32 %v492, %v504
        %507 = vrot.lane.b32.xlu0 %v479, 96
        %v508 = vpop.permute.xlu0 %507
        %509 = vrot.lane.b32.xlu0 %v480, 96
        %v510 = vpop.permute.xlu0 %509
        %v511 = vrot.slane %v508, 4
        %v512 = vrot.slane %v510, 4
        %v513 = vsel %vm221, %v511, %v512
        %v514 = vsel %vm348, %v508, %v513
        %v516 = vmax.f32 %v506, %v514
        %517 = vrot.lane.b32.xlu0 %v493, 32
        %v518 = vpop.permute.xlu0 %517
        %519 = vrot.lane.b32.xlu0 %v494, 32
        %v520 = vpop.permute.xlu0 %519
        %v521 = vrot.slane %v518, 4
        %v522 = vrot.slane %v520, 4
        %v523 = vsel %vm221, %v521, %v522
        %v524 = vsel %vm359, %v518, %v523
        %v526 = vmax.f32 %v516, %v524
        %s527 = scalar_lea.vmem %s152, 16 [#allocation6]
        %528 = vst [vmem:[%s527] sm:$0xff] %v526
        %529 = vst [vmem:[#allocation2 + $0x4] sm:$0xff] %v526
        %v530 = vld [vmem:[#allocation2 + $0x4] sm:$0xff]
        %v531 = vld [vmem:[#allocation2 + $0xc] sm:$0xf]
        %v532 = vld [vmem:[#allocation2] sm:$0xff]
        %v533 = vld [vmem:[#allocation2 + $0x8] sm:$0xf]
        %536 = vst [vmem:[#allocation1] ss:$2 sm:$0xff] %v530
        %s537 = scalar_lea.vmem [#allocation1], 16
        %538 = vst [vmem:[%s537] ss:$2 sm:$0xff] %v531
        %v539 = vld.sshfl [vmem:[#allocation1] sm:$0xff pattern:$0x75316420]
        %v540 = vld.sshfl [vmem:[#allocation1 + $0x8] sm:$0xff pattern:$0x75316420]
        %v541 = vld.sshfl [vmem:[#allocation1 + $0x10] sm:$0xff pattern:$0x75316420]
        %542 = vrot.lane.b32.xlu0 %v539, 127
        %v543 = vpop.permute.xlu0 %542
        %544 = vrot.lane.b32.xlu0 %v540, 127
        %v545 = vpop.permute.xlu0 %544
        %546 = vrot.lane.b32.xlu0 %v541, 127
        %v547 = vpop.permute.xlu0 %546
        %v548 = vsel %vm211, %v543, %v545
        %v549 = vsel %vm211, %v545, %v547
        %v552 = vsel %vm182, %v548, -inf
        %v553 = vsel %vm183, %v549, -inf
        %v556 = vrot.slane %v553, 4
        %v557 = vsel %vm221, %v552, %v556
        %v559 = vmax.f32 %v526, %v557
        %562 = vst [vmem:[#allocation1] ss:$2 sm:$0xff] %v532
        %s563 = scalar_lea.vmem [#allocation1], 16
        %564 = vst [vmem:[%s563] ss:$2 sm:$0xff] %v533
        %v565 = vld.sshfl [vmem:[#allocation1] sm:$0xff pattern:$0x75316420]
        %v566 = vld.sshfl [vmem:[#allocation1 + $0x8] sm:$0xff pattern:$0x75316420]
        %v567 = vld.sshfl [vmem:[#allocation1 + $0x10] sm:$0xff pattern:$0x75316420]
        %568 = vrot.lane.b32.xlu0 %v565, 1
        %v569 = vpop.permute.xlu0 %568
        %570 = vrot.lane.b32.xlu0 %v566, 1
        %v571 = vpop.permute.xlu0 %570
        %572 = vrot.lane.b32.xlu0 %v567, 1
        %v573 = vpop.permute.xlu0 %572
        %v574 = vsel %vm239, %v569, %v571
        %v575 = vsel %vm239, %v571, %v573
        %v578 = vsel %vm186, %v574, -inf
        %v579 = vsel %vm187, %v575, -inf
        %v582 = vrot.slane %v579, 4
        %v583 = vsel %vm221, %v578, %v582
        %v585 = vmax.f32 %v559, %v583
        %v586 = vld [vmem:[#allocation2 + $0x4] sm:$0xff]
        %v587 = vld [vmem:[#allocation2 + $0xc] sm:$0xf]
        %v588 = vld [vmem:[#allocation2] sm:$0xff]
        %v589 = vld [vmem:[#allocation2 + $0x8] sm:$0xf]
        %592 = vst [vmem:[#allocation1] ss:$2 sm:$0xff] %v586
        %s593 = scalar_lea.vmem [#allocation1], 16
        %594 = vst [vmem:[%s593] ss:$2 sm:$0xff] %v587
        %v595 = vld.sshfl [vmem:[#allocation1] sm:$0xff pattern:$0x75316420]
        %v596 = vld.sshfl [vmem:[#allocation1 + $0x8] sm:$0xff pattern:$0x75316420]
        %v597 = vld.sshfl [vmem:[#allocation1 + $0x10] sm:$0xff pattern:$0x75316420]
        %598 = vrot.lane.b32.xlu0 %v595, 126
        %v599 = vpop.permute.xlu0 %598
        %600 = vrot.lane.b32.xlu0 %v596, 126
        %v601 = vpop.permute.xlu0 %600
        %602 = vrot.lane.b32.xlu0 %v597, 126
        %v603 = vpop.permute.xlu0 %602
        %v604 = vsel %vm270, %v599, %v601
        %v605 = vsel %vm270, %v601, %v603
        %v608 = vsel %vm184, %v604, -inf
        %v609 = vsel %vm185, %v605, -inf
        %v612 = vrot.slane %v609, 4
        %v613 = vsel %vm221, %v608, %v612
        %v615 = vmax.f32 %v585, %v613
        %618 = vst [vmem:[#allocation1] ss:$2 sm:$0xff] %v588
        %s619 = scalar_lea.vmem [#allocation1], 16
        %620 = vst [vmem:[%s619] ss:$2 sm:$0xff] %v589
        %v621 = vld.sshfl [vmem:[#allocation1] sm:$0xff pattern:$0x75316420]
        %v622 = vld.sshfl [vmem:[#allocation1 + $0x8] sm:$0xff pattern:$0x75316420]
        %v623 = vld.sshfl [vmem:[#allocation1 + $0x10] sm:$0xff pattern:$0x75316420]
        %624 = vrot.lane.b32.xlu0 %v621, 2
        %v625 = vpop.permute.xlu0 %624
        %626 = vrot.lane.b32.xlu0 %v622, 2
        %v627 = vpop.permute.xlu0 %626
        %628 = vrot.lane.b32.xlu0 %v623, 2
        %v629 = vpop.permute.xlu0 %628
        %v630 = vsel %vm297, %v625, %v627
        %v631 = vsel %vm297, %v627, %v629
        %v634 = vsel %vm188, %v630, -inf
        %v635 = vsel %vm189, %v631, -inf
        %v638 = vrot.slane %v635, 4
        %v639 = vsel %vm221, %v634, %v638
        %v641 = vmax.f32 %v615, %v639
        %642 = vst [vmem:[#allocation2 + $0x4] sm:$0xff] %v641
        %v643 = vld [vmem:[#allocation2 + $0x4] sm:$0xff]
        %v644 = vld [vmem:[#allocation2 + $0xc] sm:$0xf]
        %647 = vrot.lane.b32.xlu0 %v643, 112
        %v648 = vpop.permute.xlu0 %647
        %649 = vrot.lane.b32.xlu0 %v644, 112
        %v650 = vpop.permute.xlu0 %649
        %v651 = vrot.slane %v648, 4
        %v652 = vrot.slane %v650, 4
        %v653 = vsel %vm221, %v651, %v652
        %v654 = vsel %vm322, %v648, %v653
        %v656 = vmax.f32 %v641, %v654
        %v657 = vld [vmem:[#allocation2] sm:$0xff]
        %v658 = vld [vmem:[#allocation2 + $0x8] sm:$0xf]
        %661 = vrot.lane.b32.xlu0 %v657, 16
        %v662 = vpop.permute.xlu0 %661
        %663 = vrot.lane.b32.xlu0 %v658, 16
        %v664 = vpop.permute.xlu0 %663
        %v665 = vrot.slane %v662, 4
        %v666 = vrot.slane %v664, 4
        %v667 = vsel %vm221, %v665, %v666
        %v668 = vsel %vm337, %v662, %v667
        %v670 = vmax.f32 %v656, %v668
        %671 = vrot.lane.b32.xlu0 %v643, 96
        %v672 = vpop.permute.xlu0 %671
        %673 = vrot.lane.b32.xlu0 %v644, 96
        %v674 = vpop.permute.xlu0 %673
        %v675 = vrot.slane %v672, 4
        %v676 = vrot.slane %v674, 4
        %v677 = vsel %vm221, %v675, %v676
        %v678 = vsel %vm348, %v672, %v677
        %v680 = vmax.f32 %v670, %v678
        %681 = vrot.lane.b32.xlu0 %v657, 32
        %v682 = vpop.permute.xlu0 %681
        %683 = vrot.lane.b32.xlu0 %v658, 32
        %v684 = vpop.permute.xlu0 %683
        %v685 = vrot.slane %v682, 4
        %v686 = vrot.slane %v684, 4
        %v687 = vsel %vm221, %v685, %v686
        %v688 = vsel %vm359, %v682, %v687
        %v690 = vmax.f32 %v680, %v688
        %s691 = scalar_lea.vmem %s152, 24 [#allocation6]
        %692 = vst [vmem:[%s691] sm:$0xff] %v690
        %s693 = sand.u32 %s68, 1
        %s694 = scalar_lea.sflag [#allocation5], %s693
        %s695 = sand.u32 %s68, 1
        %s696 = smul.addr %s695, 32
        %s697 = scalar_lea.vmem [#allocation6], %s696
        // Predicated region
        $region29: #{tpu_custom_call.1} parent=23 // pred_check
          %p698 = pneg %p78
        $region30: #{tpu_custom_call.1} parent=23 // pred_check_branch
          %700 = sbr.rel (%p698) target = $region32
        $region31: #{tpu_custom_call.1} parent=23 // pred_region
          %702 = vsyncadd %s694, 0
          %s703 = smul.addr %s23, 2
          %s704 = smul.addr %s22, 8
          %s705 = sadd.s32 %s703, %s704
          %s706 = smul.addr %s705, 4
          %s707 = scalar_lea.hbm %s1, %s706
          %s708 = sshll.u32 %s697, 4
          %s709 = int_to_ptr.vmem [resolvable:$true] %s708
          %s710 = sshll.u32 %s707, 4
          %s711 = int_to_ptr.hbm [resolvable:$true] %s710
          %716 = dma.vmem_to_hbm [thread:$0]  %s709, 512, %s711, %s694, 128, 128, 8
        $region32: #{tpu_custom_call.1} parent=23 // pred_fallthru
          _
      $region24: #{tpu_custom_call.1} parent=5 // pred_fallthru
        _
      %p717 = scmp.le.s32.totalorder 2, %s13
      // Predicated region
      $region33: #{tpu_custom_call.1} parent=5 // pred_check
        %p718 = pneg %p717
      $region34: #{tpu_custom_call.1} parent=5 // pred_check_branch
        %720 = sbr.rel (%p718) target = $region36
      $region35: #{tpu_custom_call.1} parent=5 // pred_region
        %s721 = ssub.s32 %s13, 2
        // Predicated region
        $region37: #{tpu_custom_call.1} parent=35 // pred_check
          %p722 = pneg %p84
        $region38: #{tpu_custom_call.1} parent=35 // pred_check_branch
          %724 = sbr.rel (%p722) target = $region40
        $region39: #{tpu_custom_call.1} parent=35 // pred_region
          %s725 = sand.u32 %s69, 1
          %s726 = scalar_lea.sflag [#allocation5], %s725
          %s727 = sand.u32 %s69, 1
          %s728 = smul.addr %s727, 32
          %s729 = scalar_lea.vmem [#allocation6], %s728
          %731 = dma.done %s726, 512
        $region40: #{tpu_custom_call.1} parent=35 // pred_fallthru
          _
      $region36: #{tpu_custom_call.1} parent=5 // pred_fallthru
        _
    $region6: #{tpu_custom_call.1} parent=1 // loop_footer
      %s17 = sadd.s32 1, %s13
    $region7: #{tpu_custom_call.1} parent=1 // loop_footer_branch
      %12 = sbr.rel target = $region3
    $region8: #{tpu_custom_call.1} parent=1 // loop_exit
      _
    %732 = vsyncpa [#allocation4], 1
    %s733 = scalar_lea.sflag [#allocation4], 1
    %734 = vsyncpa %s733, 1
    %735 = vsyncpa [#allocation5], 1
    %s736 = scalar_lea.sflag [#allocation5], 1
    %737 = vsyncpa %s736, 1

</llo_original>
